<compile_context>
chip_gen: v5e
topology: v5e:2x2
jax: 0.10.0
libtpu: 0.0.40
codegen_flags: <defaults>
</compile_context>

<pallas_src>
import functools

import numpy as np
import jax
import jax.numpy as jnp
from jax import lax
from jax.experimental import pallas as pl
from jax.experimental.pallas import tpu as pltpu


def _coral_tiles_kernel(rows_ref, cols_ref,           # scalar prefetch (SMEM)
                        xsi_ref, xsj_ref,              # xs column blocks i, j
                        xti_ref, xtj_ref,              # xt column blocks i, j
                        inv_ref,                       # (2,) f32 in SMEM: 1/||xs||_F, 1/||xt||_F
                        o_ref,                         # (1, 1) f32 accumulator / output
                        *, feat_dim):
    k = pl.program_id(0)
    nk = pl.num_programs(0)

    @pl.when(k == 0)
    def _init():
        o_ref[...] = jnp.zeros_like(o_ref)

    inv_s = inv_ref[0]
    inv_t = inv_ref[1]

    def gram_tile(i_ref, j_ref, scale):
        # normalize (x / ||x||_F), center (mean(x,0) - x), then contract over
        # the batch axis without materializing a transpose.
        a = i_ref[...].astype(jnp.float32) * scale
        c = j_ref[...].astype(jnp.float32) * scale
        a = jnp.mean(a, axis=0, keepdims=True) - a
        c = jnp.mean(c, axis=0, keepdims=True) - c
        return lax.dot_general(
            a, c,
            dimension_numbers=(((0,), (0,)), ((), ())),
            preferred_element_type=jnp.float32)

    cs_tile = gram_tile(xsi_ref, xsj_ref, inv_s)
    ct_tile = gram_tile(xti_ref, xtj_ref, inv_t)
    diff = cs_tile - ct_tile
    partial = jnp.sum(diff * diff)

    i = rows_ref[k]
    j = cols_ref[k]
    # Cs - Ct is symmetric: off-diagonal tiles (i < j) stand in for (j, i) too.
    w = jnp.where(i == j, jnp.float32(1.0), jnp.float32(2.0))
    o_ref[...] += partial * w

    @pl.when(k == nk - 1)
    def _finalize():
        o_ref[...] = jnp.sqrt(o_ref[...]) / jnp.float32(feat_dim)


def _pick_tile(d, b, itemsize):
    """Column-tile width and padded feature dim."""
    if d <= 128:
        return d, d
    # Prefer 256-wide tiles (v6e / v7x 256x256 MXU); fall back to 128 when the
    # batch makes the double-buffered column blocks too big for scoped VMEM.
    budget_ok = (8 * b * 256 * itemsize) <= (24 << 20)  # 4 block inputs x 2 buffers
    candidates = (256, 128) if budget_ok else (128,)
    for t in candidates:
        if d % t == 0:
            return t, d
    t = candidates[-1]
    dp = -(-d // t) * t           # pad up; zero columns are exactly neutral
    return t, dp


def deep_coral_loss(xs, xt):
    """CORAL loss between two (b, d) feature batches (DeepCORAL.forward, ema=1.0)."""
    assert xs.shape == xt.shape and xs.ndim == 2
    b, d = xs.shape
    itemsize = jnp.dtype(xs.dtype).itemsize

    tile, dp = _pick_tile(d, b, itemsize)
    xs_p, xt_p = xs, xt
    if dp != d:
        xs_p = jnp.pad(xs, ((0, 0), (0, dp - d)))
        xt_p = jnp.pad(xt, ((0, 0), (0, dp - d)))

    ni = dp // tile
    tri_i, tri_j = np.triu_indices(ni)
    rows = jnp.asarray(tri_i, dtype=jnp.int32)
    cols = jnp.asarray(tri_j, dtype=jnp.int32)
    ntri = int(tri_i.shape[0])

    # Tiny O(b*d) pre-pass: exact reciprocal Frobenius norms (normalize_tensor).
    inv_s = 1.0 / jnp.sqrt(jnp.sum(jnp.square(xs.astype(jnp.float32))))
    inv_t = 1.0 / jnp.sqrt(jnp.sum(jnp.square(xt.astype(jnp.float32))))
    inv_fro = jnp.stack([inv_s, inv_t]).astype(jnp.float32)   # shape (2,)

    kernel = functools.partial(_coral_tiles_kernel, feat_dim=d)

    cost = pl.CostEstimate(
        flops=4 * b * tile * tile * ntri,                      # two Grams per tile
        transcendentals=1,
        bytes_accessed=4 * b * tile * itemsize * ntri + 8 + 4,
    )

    out = pl.pallas_call(
        kernel,
        out_shape=jax.ShapeDtypeStruct((1, 1), jnp.float32),
        grid_spec=pltpu.PrefetchScalarGridSpec(
            num_scalar_prefetch=2,                             # rows, cols
            grid=(ntri,),
            in_specs=[
                pl.BlockSpec((b, tile), lambda k, r, c: (0, r[k])),   # xs[:, i-block]
                pl.BlockSpec((b, tile), lambda k, r, c: (0, c[k])),   # xs[:, j-block]
                pl.BlockSpec((b, tile), lambda k, r, c: (0, r[k])),   # xt[:, i-block]
                pl.BlockSpec((b, tile), lambda k, r, c: (0, c[k])),   # xt[:, j-block]
                pl.BlockSpec(memory_space=pltpu.MemorySpace.SMEM),    # inv_fro scalars
            ],
            out_specs=pl.BlockSpec((1, 1), lambda k, r, c: (0, 0)),
        ),
        compiler_params=pltpu.CompilerParams(
            # Single-scalar accumulator across the grid -> reduction axis.
            dimension_semantics=("arbitrary",)),
        cost_estimate=cost,
    )(rows, cols, xs_p, xs_p, xt_p, xt_p, inv_fro)
    return out[0, 0]


class DeepCORAL:
    """JAX/Pallas port of the PyTorch DeepCORAL module (ema=1.0 fast path)."""

    def __init__(self, ema=1.0, detach_prev=False):
        self.ema = max(0.0, min(1.0, ema))
        self.detach_prev = detach_prev
        self.Cs = None
        self.Ct = None

    def __call__(self, xs, xt):
        if self.ema is None or self.ema == 1.0:
            return deep_coral_loss(xs, xt)
        # TODO(synk): EMA (< 1.0) path keeps stateful d x d covariance buffers
        # across calls; not fused into the Pallas kernel here.
        raise NotImplementedError("Only the ema=1.0 path is implemented in Pallas.")


def _reference_coral_loss(xs, xt):
    """Pure-JAX reference matching the PyTorch code (same normalize_tensor assumption)."""
    def cov(x):
        xn = x / jnp.sqrt(jnp.sum(x * x))
        c = jnp.mean(xn, axis=0, keepdims=True) - xn
        return c.T @ c
    Cs, Ct = cov(xs), cov(xt)
    return jnp.sqrt(jnp.sum((Cs - Ct) ** 2)) / xs.shape[1]


if __name__ == "__main__":
    key = jax.random.PRNGKey(0)
    k1, k2, k3, k4 = jax.random.split(key, 4)

    # Small shape (d < 128 -> single full-width tile, 1 grid step).
    xs = jax.random.normal(k1, (8, 32), dtype=jnp.float32)
    xt = jax.random.normal(k2, (8, 32), dtype=jnp.float32) * 1.5 + 0.3
    loss = jax.block_until_ready(deep_coral_loss(xs, xt))
    ref = _reference_coral_loss(xs, xt)
    assert jnp.allclose(loss, ref, rtol=1e-5, atol=1e-6), (loss, ref)

    # Shape exercising the tiled symmetric grid (d=384 -> 3x3 tiles, 6 grid steps).
    xs2 = jax.random.normal(k3, (16, 384), dtype=jnp.float32)
    xt2 = jax.random.normal(k4, (16, 384), dtype=jnp.float32) * 0.7 - 0.2
    loss2 = jax.block_until_ready(deep_coral_loss(xs2, xt2))
    ref2 = _reference_coral_loss(xs2, xt2)
    assert jnp.allclose(loss2, ref2, rtol=1e-5, atol=1e-6), (loss2, ref2)

    print("KERNEL_OK")
</pallas_src>

<mosaic_0001>
module attributes {stable_mosaic.version = 11 : i64} {
  func.func @_coral_tiles_kernel(%arg0: i32, %arg1: memref<1xi32, #tpu.memory_space<smem>>, %arg2: memref<1xi32, #tpu.memory_space<smem>>, %arg3: memref<8x32xf32, #tpu.memory_space<vmem>>, %arg4: memref<8x32xf32, #tpu.memory_space<vmem>>, %arg5: memref<8x32xf32, #tpu.memory_space<vmem>>, %arg6: memref<8x32xf32, #tpu.memory_space<vmem>>, %arg7: memref<2xf32, #tpu.memory_space<smem>>, %arg8: memref<1x1xf32, #tpu.memory_space<vmem>>) attributes {dimension_semantics = [#tpu.dimension_semantics<arbitrary>], iteration_bounds = array<i64: 1>, scalar_prefetch = 2 : i64, scratch_operands = 0 : i64, tpu.core_type = #tpu.core_type<tc>, window_params = [{transform_indices = @transform_0, window_bounds = array<i64: 8, 32>}, {transform_indices = @transform_1, window_bounds = array<i64: 8, 32>}, {transform_indices = @transform_2, window_bounds = array<i64: 8, 32>}, {transform_indices = @transform_3, window_bounds = array<i64: 8, 32>}, {transform_indices = @transform_4, window_bounds = array<i64: 2>}, {pipeline_mode = #tpu.pipeline_mode<synchronous>, transform_indices = @transform_5, window_bounds = array<i64: 1, 1>}]} {
    %c0_i32 = arith.constant 0 : i32
    %0 = arith.cmpi eq, %arg0, %c0_i32 : i32
    %1 = arith.extui %0 : i1 to i32
    %c0_i32_0 = arith.constant 0 : i32
    %2 = arith.cmpi ne, %1, %c0_i32_0 : i32
    scf.if %2 {
      %cst_27 = arith.constant 0.000000e+00 : f32
      %63 = vector.broadcast %cst_27 : f32 to vector<1x1xf32>
      %c0_28 = arith.constant 0 : index
      %c0_29 = arith.constant 0 : index
      %64 = vector.load %arg8[%c0_28, %c0_29] : memref<1x1xf32, #tpu.memory_space<vmem>>, vector<1x1xf32>
      tpu.vector_store %arg8[%c0_28, %c0_29], %63 {strides = array<i32>} : memref<1x1xf32, #tpu.memory_space<vmem>>, vector<1x1xf32>,
    } else {
    }
    %c0 = arith.constant 0 : index
    %3 = memref.load %arg7[%c0] : memref<2xf32, #tpu.memory_space<smem>>
    %c1 = arith.constant 1 : index
    %4 = memref.load %arg7[%c1] : memref<2xf32, #tpu.memory_space<smem>>
    %c0_1 = arith.constant 0 : index
    %c0_2 = arith.constant 0 : index
    %5 = vector.load %arg3[%c0_1, %c0_2] : memref<8x32xf32, #tpu.memory_space<vmem>>, vector<8x32xf32>
    %6 = vector.broadcast %3 : f32 to vector<8x32xf32>
    %7 = arith.mulf %5, %6 : vector<8x32xf32>
    %c0_3 = arith.constant 0 : index
    %c0_4 = arith.constant 0 : index
    %8 = vector.load %arg4[%c0_3, %c0_4] : memref<8x32xf32, #tpu.memory_space<vmem>>, vector<8x32xf32>
    %9 = vector.broadcast %3 : f32 to vector<8x32xf32>
    %10 = arith.mulf %8, %9 : vector<8x32xf32>
    %cst = arith.constant dense<0.000000e+00> : vector<32xf32>
    %11 = vector.multi_reduction <add>, %7, %cst [0] : vector<8x32xf32> to vector<32xf32>
    %12 = vector.shape_cast %11 : vector<32xf32> to vector<1x32xf32>
    %cst_5 = arith.constant 8.000000e+00 : f32
    %13 = vector.broadcast %cst_5 : f32 to vector<1x32xf32>
    %14 = arith.divf %12, %13 : vector<1x32xf32>
    %15 = vector.broadcast %14 : vector<1x32xf32> to vector<8x32xf32>
    %16 = arith.subf %15, %7 : vector<8x32xf32>
    %cst_6 = arith.constant dense<0.000000e+00> : vector<32xf32>
    %17 = vector.multi_reduction <add>, %10, %cst_6 [0] : vector<8x32xf32> to vector<32xf32>
    %18 = vector.shape_cast %17 : vector<32xf32> to vector<1x32xf32>
    %cst_7 = arith.constant 8.000000e+00 : f32
    %19 = vector.broadcast %cst_7 : f32 to vector<1x32xf32>
    %20 = arith.divf %18, %19 : vector<1x32xf32>
    %21 = vector.broadcast %20 : vector<1x32xf32> to vector<8x32xf32>
    %22 = arith.subf %21, %10 : vector<8x32xf32>
    %cst_8 = arith.constant dense<0.000000e+00> : vector<32x32xf32>
    %23 = tpu.matmul %16, %22, %cst_8 {dimension_numbers = #tpu.dot_dimension_numbers<[0], [0], [1], [1], [0, 1, 1, 1], [], []>} : vector<8x32xf32>, vector<8x32xf32>, vector<32x32xf32> -> vector<32x32xf32>
    %c0_9 = arith.constant 0 : index
    %c0_10 = arith.constant 0 : index
    %24 = vector.load %arg5[%c0_9, %c0_10] : memref<8x32xf32, #tpu.memory_space<vmem>>, vector<8x32xf32>
    %25 = vector.broadcast %4 : f32 to vector<8x32xf32>
    %26 = arith.mulf %24, %25 : vector<8x32xf32>
    %c0_11 = arith.constant 0 : index
    %c0_12 = arith.constant 0 : index
    %27 = vector.load %arg6[%c0_11, %c0_12] : memref<8x32xf32, #tpu.memory_space<vmem>>, vector<8x32xf32>
    %28 = vector.broadcast %4 : f32 to vector<8x32xf32>
    %29 = arith.mulf %27, %28 : vector<8x32xf32>
    %cst_13 = arith.constant dense<0.000000e+00> : vector<32xf32>
    %30 = vector.multi_reduction <add>, %26, %cst_13 [0] : vector<8x32xf32> to vector<32xf32>
    %31 = vector.shape_cast %30 : vector<32xf32> to vector<1x32xf32>
    %cst_14 = arith.constant 8.000000e+00 : f32
    %32 = vector.broadcast %cst_14 : f32 to vector<1x32xf32>
    %33 = arith.divf %31, %32 : vector<1x32xf32>
    %34 = vector.broadcast %33 : vector<1x32xf32> to vector<8x32xf32>
    %35 = arith.subf %34, %26 : vector<8x32xf32>
    %cst_15 = arith.constant dense<0.000000e+00> : vector<32xf32>
    %36 = vector.multi_reduction <add>, %29, %cst_15 [0] : vector<8x32xf32> to vector<32xf32>
    %37 = vector.shape_cast %36 : vector<32xf32> to vector<1x32xf32>
    %cst_16 = arith.constant 8.000000e+00 : f32
    %38 = vector.broadcast %cst_16 : f32 to vector<1x32xf32>
    %39 = arith.divf %37, %38 : vector<1x32xf32>
    %40 = vector.broadcast %39 : vector<1x32xf32> to vector<8x32xf32>
    %41 = arith.subf %40, %29 : vector<8x32xf32>
    %cst_17 = arith.constant dense<0.000000e+00> : vector<32x32xf32>
    %42 = tpu.matmul %35, %41, %cst_17 {dimension_numbers = #tpu.dot_dimension_numbers<[0], [0], [1], [1], [0, 1, 1, 1], [], []>} : vector<8x32xf32>, vector<8x32xf32>, vector<32x32xf32> -> vector<32x32xf32>
    %43 = arith.subf %23, %42 : vector<32x32xf32>
    %44 = arith.mulf %43, %43 : vector<32x32xf32>
    %45 = vector.shape_cast %44 : vector<32x32xf32> to vector<1x32x32xf32>
    %cst_18 = arith.constant dense<0.000000e+00> : vector<1xf32>
    %46 = vector.multi_reduction <add>, %45, %cst_18 [1, 2] : vector<1x32x32xf32> to vector<1xf32>
    %47 = vector.shape_cast %46 : vector<1xf32> to vector<1x1x1xf32>
    %48 = vector.extract %47[0, 0, 0] : f32 from vector<1x1x1xf32>
    %49 = arith.index_cast %arg0 : i32 to index
    %50 = memref.load %arg1[%49] : memref<1xi32, #tpu.memory_space<smem>>
    %51 = arith.index_cast %arg0 : i32 to index
    %52 = memref.load %arg2[%51] : memref<1xi32, #tpu.memory_space<smem>>
    %53 = arith.cmpi eq, %50, %52 : i32
    %cst_19 = arith.constant 1.000000e+00 : f32
    %cst_20 = arith.constant 2.000000e+00 : f32
    %54 = arith.select %53, %cst_19, %cst_20 : f32
    %c0_21 = arith.constant 0 : index
    %c0_22 = arith.constant 0 : index
    %55 = vector.load %arg8[%c0_21, %c0_22] : memref<1x1xf32, #tpu.memory_space<vmem>>, vector<1x1xf32>
    %56 = arith.mulf %48, %54 : f32
    %57 = vector.broadcast %56 : f32 to vector<1x1xf32>
    %58 = arith.addf %55, %57 : vector<1x1xf32>
    %c0_23 = arith.constant 0 : index
    %c0_24 = arith.constant 0 : index
    %59 = vector.load %arg8[%c0_23, %c0_24] : memref<1x1xf32, #tpu.memory_space<vmem>>, vector<1x1xf32>
    tpu.vector_store %arg8[%c0_23, %c0_24], %58 {strides = array<i32>} : memref<1x1xf32, #tpu.memory_space<vmem>>, vector<1x1xf32>,
    %c0_i32_25 = arith.constant 0 : i32
    %60 = arith.cmpi eq, %arg0, %c0_i32_25 : i32
    %61 = arith.extui %60 : i1 to i32
    %c0_i32_26 = arith.constant 0 : i32
    %62 = arith.cmpi ne, %61, %c0_i32_26 : i32
    scf.if %62 {
      %c0_27 = arith.constant 0 : index
      %c0_28 = arith.constant 0 : index
      %63 = vector.load %arg8[%c0_27, %c0_28] : memref<1x1xf32, #tpu.memory_space<vmem>>, vector<1x1xf32>
      %64 = math.sqrt %63 : vector<1x1xf32>
      %cst_29 = arith.constant 3.200000e+01 : f32
      %65 = vector.broadcast %cst_29 : f32 to vector<1x1xf32>
      %66 = arith.divf %64, %65 : vector<1x1xf32>
      %c0_30 = arith.constant 0 : index
      %c0_31 = arith.constant 0 : index
      %67 = vector.load %arg8[%c0_30, %c0_31] : memref<1x1xf32, #tpu.memory_space<vmem>>, vector<1x1xf32>
      tpu.vector_store %arg8[%c0_30, %c0_31], %66 {strides = array<i32>} : memref<1x1xf32, #tpu.memory_space<vmem>>, vector<1x1xf32>,
    } else {
    }
    return
  }
  func.func @transform_0(%arg0: i32, %arg1: memref<1xi32, #tpu.memory_space<smem>>, %arg2: memref<1xi32, #tpu.memory_space<smem>>) -> (i32, i32) {
    %0 = arith.index_cast %arg0 : i32 to index
    %1 = memref.load %arg1[%0] : memref<1xi32, #tpu.memory_space<smem>>
    %c0_i32 = arith.constant 0 : i32
    %c0_i32_0 = arith.constant 0 : i32
    return %c0_i32, %1 : i32, i32
  }
  func.func @transform_1(%arg0: i32, %arg1: memref<1xi32, #tpu.memory_space<smem>>, %arg2: memref<1xi32, #tpu.memory_space<smem>>) -> (i32, i32) {
    %0 = arith.index_cast %arg0 : i32 to index
    %1 = memref.load %arg2[%0] : memref<1xi32, #tpu.memory_space<smem>>
    %c0_i32 = arith.constant 0 : i32
    %c0_i32_0 = arith.constant 0 : i32
    return %c0_i32, %1 : i32, i32
  }
  func.func @transform_2(%arg0: i32, %arg1: memref<1xi32, #tpu.memory_space<smem>>, %arg2: memref<1xi32, #tpu.memory_space<smem>>) -> (i32, i32) {
    %0 = arith.index_cast %arg0 : i32 to index
    %1 = memref.load %arg1[%0] : memref<1xi32, #tpu.memory_space<smem>>
    %c0_i32 = arith.constant 0 : i32
    %c0_i32_0 = arith.constant 0 : i32
    return %c0_i32, %1 : i32, i32
  }
  func.func @transform_3(%arg0: i32, %arg1: memref<1xi32, #tpu.memory_space<smem>>, %arg2: memref<1xi32, #tpu.memory_space<smem>>) -> (i32, i32) {
    %0 = arith.index_cast %arg0 : i32 to index
    %1 = memref.load %arg2[%0] : memref<1xi32, #tpu.memory_space<smem>>
    %c0_i32 = arith.constant 0 : i32
    %c0_i32_0 = arith.constant 0 : i32
    return %c0_i32, %1 : i32, i32
  }
  func.func @transform_4(%arg0: i32, %arg1: memref<1xi32, #tpu.memory_space<smem>>, %arg2: memref<1xi32, #tpu.memory_space<smem>>) -> i32 {
    %c0_i32 = arith.constant 0 : i32
    %c0_i32_0 = arith.constant 0 : i32
    return %c0_i32 : i32
  }
  func.func @transform_5(%arg0: i32, %arg1: memref<1xi32, #tpu.memory_space<smem>>, %arg2: memref<1xi32, #tpu.memory_space<smem>>) -> (i32, i32) {
    %c0_i32 = arith.constant 0 : i32
    %c0_i32_0 = arith.constant 0 : i32
    %c0_i32_1 = arith.constant 0 : i32
    return %c0_i32, %c0_i32_0 : i32, i32
  }
}

</mosaic_0001>

<llo_original>
// kernel: tpu_custom_call.1
$region0: #{tpu_custom_call.1}
  #allocation0 [shape = 'u32[]', space=smem, size = 0x4, offset = 0x4, fixed_abs, tag = 'smem constant byte address 0x4 - core index']
  #allocation1 [shape = 'u32[72,128]{1,0:T(1,128)}', space=vmem, size = 0x9000, scoped, tag = 'internal scratch']
  #allocation2 [shape = 's32[1]{0}', space=sflag, size = 0x4, scoped, tag = 'scoped memory for tpu_custom_call.1']
  #allocation3 [shape = 's32[1]{0:T(128)S(6)}', space=smem, size = 0x200, scoped, tag = 'prefetched SMEM operand 0']
  #allocation4 [shape = 's32[1]{0:T(128)S(6)}', space=smem, size = 0x200, scoped, tag = 'prefetched SMEM operand 1']
  %s0 = inlined_call_operand.<no memory space> [shape: s32[1], index: 0, kind: input, shape index: {}]
  %s1 = inlined_call_operand.<no memory space> [shape: s32[1], index: 1, kind: input, shape index: {}]
  %s2 = inlined_call_operand.hbm [shape: f32[8,32], index: 2, kind: input, shape index: {}]
  %s3 = inlined_call_operand.hbm [shape: f32[8,32], index: 3, kind: input, shape index: {}]
  %s4 = inlined_call_operand.hbm [shape: f32[8,32], index: 4, kind: input, shape index: {}]
  %s5 = inlined_call_operand.hbm [shape: f32[8,32], index: 5, kind: input, shape index: {}]
  %s6 = inlined_call_operand.vmem [shape: f32[2], index: 6, kind: input, shape index: {}]
  %s7 = inlined_call_operand.hbm [shape: f32[1,1], index: 7, kind: output, shape index: {}]
  %s8 = sld [smem:[#allocation0]]
  $region58: #{tpu_custom_call.1} parent=0
    _
  %s10 = ssub.s32 1, %s8
  %s11 = scalar_select 0, %s10, %s8
  %12 = sst [smem:[#allocation3]] %s0
  %13 = sst [smem:[#allocation4]] %s1
  $region1: #{tpu_custom_call.1} parent=0
    #allocation5 [shape = 'u8[4096]{0}', space=vmem, size = 0x1000, scoped, tag = 'input window, operand 2, single buffered']
    #allocation6 [shape = 's32[1]{0}', space=sflag, size = 0x4, scoped, tag = 'scoped memory for tpu_custom_call.1']
    #allocation7 [shape = 's32[1]{0}', space=sflag, size = 0x4, scoped, tag = 'scoped memory for tpu_custom_call.1']
    #allocation8 [shape = 's32[1]{0}', space=sflag, size = 0x4, scoped, tag = 'scoped memory for tpu_custom_call.1']
    #allocation9 [shape = 'u8[4096]{0}', space=vmem, size = 0x1000, scoped, tag = 'input window, operand 3, single buffered']
    #allocation10 [shape = 's32[1]{0}', space=sflag, size = 0x4, scoped, tag = 'scoped memory for tpu_custom_call.1']
    #allocation11 [shape = 'u8[4096]{0}', space=vmem, size = 0x1000, scoped, tag = 'input window, operand 4, single buffered']
    #allocation12 [shape = 'u8[4096]{0}', space=vmem, size = 0x1000, scoped, tag = 'input window, operand 5, single buffered']
    #allocation13 [shape = 's32[1]{0}', space=sflag, size = 0x4, scoped, tag = 'scoped memory for tpu_custom_call.1']
    #allocation14 [shape = 'u8[512]{0}', space=smem, size = 0x200, scoped, tag = 'input window, operand 6, single buffered']
    #allocation15 [shape = 'u8[512]{0}', space=vmem, size = 0x400, scoped, tag = 'output window, operand 0, single buffered']
    %14 = vsyncpa [#allocation6], 0
    %15 = vsyncpa [#allocation10], 0
    %16 = vsyncpa [#allocation13], 0
    %17 = vsyncpa [#allocation8], 0
    %18 = vsyncpa [#allocation7], 0
    // Predicated region
    $region2: #{tpu_custom_call.1} parent=1 // pred_check
      _
    $region3: #{tpu_custom_call.1} parent=1 // pred_check_branch
      %20 = sbr.rel (0) target = $region5
    $region4: #{tpu_custom_call.1} parent=1 // pred_region
      %s21 = sld [smem:[#allocation3]]
      %23 = vsyncadd [#allocation6], 0
      %s24 = smul.addr %s21, 8
      %s25 = scalar_lea.hbm %s2, %s24
      %s27 = sshll.u32 %s25, 4
      %s28 = int_to_ptr.hbm [resolvable:$true] %s27
      %s29 = sshll.u32 [#allocation5], 4
      %s30 = int_to_ptr.vmem [resolvable:$true] %s29
      %32 = dma.hbm_to_vmem [thread:$0]  %s28, 128, %s30, [#allocation6]
    $region5: #{tpu_custom_call.1} parent=1 // pred_fallthru
      _
    // Predicated region
    $region6: #{tpu_custom_call.1} parent=1 // pred_check
      _
    $region7: #{tpu_custom_call.1} parent=1 // pred_check_branch
      %34 = sbr.rel (0) target = $region9
    $region8: #{tpu_custom_call.1} parent=1 // pred_region
      %s35 = sld [smem:[#allocation4]]
      %37 = vsyncadd [#allocation10], 0
      %s38 = smul.addr %s35, 8
      %s39 = scalar_lea.hbm %s3, %s38
      %s41 = sshll.u32 %s39, 4
      %s42 = int_to_ptr.hbm [resolvable:$true] %s41
      %s43 = sshll.u32 [#allocation9], 4
      %s44 = int_to_ptr.vmem [resolvable:$true] %s43
      %46 = dma.hbm_to_vmem [thread:$0]  %s42, 128, %s44, [#allocation10]
    $region9: #{tpu_custom_call.1} parent=1 // pred_fallthru
      _
    // Predicated region
    $region10: #{tpu_custom_call.1} parent=1 // pred_check
      _
    $region11: #{tpu_custom_call.1} parent=1 // pred_check_branch
      %48 = sbr.rel (0) target = $region13
    $region12: #{tpu_custom_call.1} parent=1 // pred_region
      %s49 = sld [smem:[#allocation3]]
      %51 = vsyncadd [#allocation10], 0
      %s52 = smul.addr %s49, 8
      %s53 = scalar_lea.hbm %s4, %s52
      %s55 = sshll.u32 %s53, 4
      %s56 = int_to_ptr.hbm [resolvable:$true] %s55
      %s57 = sshll.u32 [#allocation11], 4
      %s58 = int_to_ptr.vmem [resolvable:$true] %s57
      %60 = dma.hbm_to_vmem [thread:$0]  %s56, 128, %s58, [#allocation10]
    $region13: #{tpu_custom_call.1} parent=1 // pred_fallthru
      _
    // Predicated region
    $region14: #{tpu_custom_call.1} parent=1 // pred_check
      _
    $region15: #{tpu_custom_call.1} parent=1 // pred_check_branch
      %62 = sbr.rel (0) target = $region17
    $region16: #{tpu_custom_call.1} parent=1 // pred_region
      %s63 = sld [smem:[#allocation4]]
      %65 = vsyncadd [#allocation13], 0
      %s66 = smul.addr %s63, 8
      %s67 = scalar_lea.hbm %s5, %s66
      %s69 = sshll.u32 %s67, 4
      %s70 = int_to_ptr.hbm [resolvable:$true] %s69
      %s71 = sshll.u32 [#allocation12], 4
      %s72 = int_to_ptr.vmem [resolvable:$true] %s71
      %74 = dma.hbm_to_vmem [thread:$0]  %s70, 128, %s72, [#allocation13]
    $region17: #{tpu_custom_call.1} parent=1 // pred_fallthru
      _
    // Predicated region
    $region18: #{tpu_custom_call.1} parent=1 // pred_check
      _
    $region19: #{tpu_custom_call.1} parent=1 // pred_check_branch
      %76 = sbr.rel (0) target = $region21
    $region20: #{tpu_custom_call.1} parent=1 // pred_region
      %78 = vsyncadd [#allocation8], 0
      %s80 = sshll.u32 %s6, 4
      %s81 = int_to_ptr.vmem [resolvable:$true] %s80
      %83 = dma.vmem_to_smem %s81, 16, [#allocation14], [#allocation8]
    $region21: #{tpu_custom_call.1} parent=1 // pred_fallthru
      _
    // Predicated region
    $region22: #{tpu_custom_call.1} parent=1 // pred_check
      _
    $region23: #{tpu_custom_call.1} parent=1 // pred_check_branch
      %85 = sbr.rel (0) target = $region25
    $region24: #{tpu_custom_call.1} parent=1 // pred_region
      %87 = dma.done [#allocation6], 128
    $region25: #{tpu_custom_call.1} parent=1 // pred_fallthru
      _
    // Predicated region
    $region26: #{tpu_custom_call.1} parent=1 // pred_check
      _
    $region27: #{tpu_custom_call.1} parent=1 // pred_check_branch
      %89 = sbr.rel (0) target = $region29
    $region28: #{tpu_custom_call.1} parent=1 // pred_region
      %91 = dma.done [#allocation10], 128
    $region29: #{tpu_custom_call.1} parent=1 // pred_fallthru
      _
    // Predicated region
    $region30: #{tpu_custom_call.1} parent=1 // pred_check
      _
    $region31: #{tpu_custom_call.1} parent=1 // pred_check_branch
      %93 = sbr.rel (0) target = $region33
    $region32: #{tpu_custom_call.1} parent=1 // pred_region
      %95 = dma.done [#allocation10], 128
    $region33: #{tpu_custom_call.1} parent=1 // pred_fallthru
      _
    // Predicated region
    $region34: #{tpu_custom_call.1} parent=1 // pred_check
      _
    $region35: #{tpu_custom_call.1} parent=1 // pred_check_branch
      %97 = sbr.rel (0) target = $region37
    $region36: #{tpu_custom_call.1} parent=1 // pred_region
      %99 = dma.done [#allocation13], 128
    $region37: #{tpu_custom_call.1} parent=1 // pred_fallthru
      _
    // Predicated region
    $region38: #{tpu_custom_call.1} parent=1 // pred_check
      _
    $region39: #{tpu_custom_call.1} parent=1 // pred_check_branch
      %101 = sbr.rel (0) target = $region41
    $region40: #{tpu_custom_call.1} parent=1 // pred_region
      %103 = dma.done [#allocation8], 16
    $region41: #{tpu_custom_call.1} parent=1 // pred_fallthru
      _
    %104 = sfence
    %s105 = sld [smem:[#allocation3]]
    %s106 = sld [smem:[#allocation4]]
    %s107 = sld [smem:[#allocation3]]
    %s108 = sld [smem:[#allocation4]]
    %p109 = scmp.eq.s32.totalorder 0, 0
    // Predicated region
    $region42: #{tpu_custom_call.1} parent=1 // pred_check
      %p110 = pneg %p109
    $region43: #{tpu_custom_call.1} parent=1 // pred_check_branch
      %112 = sbr.rel (%p110) target = $region45
    $region44: #{tpu_custom_call.1} parent=1 // pred_region
      %vm113 = vcmask 0
      %114 = vst.msk [vmem:[#allocation15] sm:$0x1] %vm113, 0.0
    $region45: #{tpu_custom_call.1} parent=1 // pred_fallthru
      _
    %s115 = sld [smem:[#allocation14]]
    %s116 = sld [smem:[#allocation14 + $0x1]]
    %v117 = vld [vmem:[#allocation5] sm:$0xff]
    %v118 = vstv %s115
    %v119 = vmul.f32 %v117, %v118
    %v120 = vld [vmem:[#allocation9] sm:$0xff]
    %v121 = vmul.f32 %v120, %v118
    %vm122 = vcmask 261120
    %v123 = vsel %vm122, %v119, 0.0
    %v124 = vrot.slane %v123, 4
    %v125 = vadd.f32 %v123, %v124
    %v126 = vrot.slane %v125, 2
    %v127 = vadd.f32 %v125, %v126
    %v128 = vrot.slane %v127, 1
    %v129 = vadd.f32 %v127, %v128
    %v130 = vrcp.pop 8.0
    %v131 = vmul.f32 8.0, %v130
    %v132 = vsub.f32 1.0, %v131
    %v133 = vmul.f32 %v130, %v132
    %v134 = vadd.f32 %v130, %v133
    %vm135 = vweird.f32 %v130
    %v136 = vsel %vm135, %v130, %v134
    %v137 = vmul.f32 %v129, %v136
    %v138 = vsub.f32 %v137, %v119
    %v139 = vsel %vm122, %v121, 0.0
    %v140 = vrot.slane %v139, 4
    %v141 = vadd.f32 %v139, %v140
    %v142 = vrot.slane %v141, 2
    %v143 = vadd.f32 %v141, %v142
    %v144 = vrot.slane %v143, 1
    %v145 = vadd.f32 %v143, %v144
    %v146 = vmul.f32 %v145, %v136
    %v147 = vsub.f32 %v146, %v121
    %148 = vxpose.xlu0.b32.start [1/16] %v138, 128
    %149 = vxpose.xlu0.b32.cont [2/16] 0.0, 128
    %150 = vxpose.xlu0.b32.cont [3/16] 0.0, 128
    %151 = vxpose.xlu0.b32.cont [4/16] 0.0, 128
    %152 = vxpose.xlu0.b32.cont [5/16] 0.0, 128
    %153 = vxpose.xlu0.b32.cont [6/16] 0.0, 128
    %154 = vxpose.xlu0.b32.cont [7/16] 0.0, 128
    %155 = vxpose.xlu0.b32.cont [8/16] 0.0, 128
    %156 = vxpose.xlu0.b32.cont [9/16] 0.0, 128
    %157 = vxpose.xlu0.b32.cont [10/16] 0.0, 128
    %158 = vxpose.xlu0.b32.cont [11/16] 0.0, 128
    %159 = vxpose.xlu0.b32.cont [12/16] 0.0, 128
    %160 = vxpose.xlu0.b32.cont [13/16] 0.0, 128
    %161 = vxpose.xlu0.b32.cont [14/16] 0.0, 128
    %162 = vxpose.xlu0.b32.cont [15/16] 0.0, 128
    %163 = vxpose.xlu0.b32.end [16/16] 0.0, 128
    %v164 = vpop.trf.xlu0
    %v165 = vpop.trf.xlu0
    %v166 = vpop.trf.xlu0
    %v167 = vpop.trf.xlu0
    %v168 = vpop.trf.xlu0
    %v169 = vpop.trf.xlu0
    %v170 = vpop.trf.xlu0
    %v171 = vpop.trf.xlu0
    %v172 = vpop.trf.xlu0
    %v173 = vpop.trf.xlu0
    %v174 = vpop.trf.xlu0
    %v175 = vpop.trf.xlu0
    %v176 = vpop.trf.xlu0
    %v177 = vpop.trf.xlu0
    %v178 = vpop.trf.xlu0
    %v179 = vpop.trf.xlu0
    %vm180 = vcmask 64512
    %v182 = vsel %vm180, %v164, 0
    %v185 = vsel %vm180, %v165, 0
    %v188 = vsel %vm180, %v166, 0
    %v191 = vsel %vm180, %v167, 0
    %193 = vmatpush.msra.mxu0 0.0
    %194 = vmatpush.msra.mxu0 0.0
    %195 = vmatpush.msra.mxu0 0.0
    %196 = vmatpush.msra.mxu0 0.0
    %197 = vmatpush.msra.mxu0 0.0
    %198 = vmatpush.msra.mxu0 0.0
    %199 = vmatpush.msra.mxu0 0.0
    %200 = vmatpush.msra.mxu0 0.0
    %201 = vmatpush.msra.mxu0 0.0
    %202 = vmatpush.msra.mxu0 0.0
    %203 = vmatpush.msra.mxu0 0.0
    %204 = vmatpush.msra.mxu0 0.0
    %205 = vmatpush.msra.mxu0 0.0
    %206 = vmatpush.msra.mxu0 0.0
    %207 = vmatpush.msra.mxu0 0.0
    %208 = vmatpush.msra.mxu0 %v147
    %209 = vmatmul.f32.gmra.mxu0 %v182
    %v210 = vpop.f32.mrf.mxu0
    %v211 = vadd.f32 0.0, %v210
    %212 = vmatmul.f32.gmra.mxu0 %v185
    %v213 = vpop.f32.mrf.mxu0
    %v214 = vadd.f32 0.0, %v213
    %215 = vmatmul.f32.gmra.mxu0 %v188
    %v216 = vpop.f32.mrf.mxu0
    %v217 = vadd.f32 0.0, %v216
    %218 = vmatmul.f32.gmra.mxu0 %v191
    %v219 = vpop.f32.mrf.mxu0
    %v220 = vadd.f32 0.0, %v219
    %221 = vdwg.mxu0
    %v222 = vld [vmem:[#allocation11] sm:$0xff]
    %v223 = vstv %s116
    %v224 = vmul.f32 %v222, %v223
    %v225 = vld [vmem:[#allocation12] sm:$0xff]
    %v226 = vmul.f32 %v225, %v223
    %v227 = vsel %vm122, %v224, 0.0
    %v228 = vrot.slane %v227, 4
    %v229 = vadd.f32 %v227, %v228
    %v230 = vrot.slane %v229, 2
    %v231 = vadd.f32 %v229, %v230
    %v232 = vrot.slane %v231, 1
    %v233 = vadd.f32 %v231, %v232
    %v234 = vmul.f32 %v233, %v136
    %v235 = vsub.f32 %v234, %v224
    %v236 = vsel %vm122, %v226, 0.0
    %v237 = vrot.slane %v236, 4
    %v238 = vadd.f32 %v236, %v237
    %v239 = vrot.slane %v238, 2
    %v240 = vadd.f32 %v238, %v239
    %v241 = vrot.slane %v240, 1
    %v242 = vadd.f32 %v240, %v241
    %v243 = vmul.f32 %v242, %v136
    %v244 = vsub.f32 %v243, %v226
    %245 = vxpose.xlu0.b32.start [1/16] %v235, 128
    %246 = vxpose.xlu0.b32.cont [2/16] 0.0, 128
    %247 = vxpose.xlu0.b32.cont [3/16] 0.0, 128
    %248 = vxpose.xlu0.b32.cont [4/16] 0.0, 128
    %249 = vxpose.xlu0.b32.cont [5/16] 0.0, 128
    %250 = vxpose.xlu0.b32.cont [6/16] 0.0, 128
    %251 = vxpose.xlu0.b32.cont [7/16] 0.0, 128
    %252 = vxpose.xlu0.b32.cont [8/16] 0.0, 128
    %253 = vxpose.xlu0.b32.cont [9/16] 0.0, 128
    %254 = vxpose.xlu0.b32.cont [10/16] 0.0, 128
    %255 = vxpose.xlu0.b32.cont [11/16] 0.0, 128
    %256 = vxpose.xlu0.b32.cont [12/16] 0.0, 128
    %257 = vxpose.xlu0.b32.cont [13/16] 0.0, 128
    %258 = vxpose.xlu0.b32.cont [14/16] 0.0, 128
    %259 = vxpose.xlu0.b32.cont [15/16] 0.0, 128
    %260 = vxpose.xlu0.b32.end [16/16] 0.0, 128
    %v261 = vpop.trf.xlu0
    %v262 = vpop.trf.xlu0
    %v263 = vpop.trf.xlu0
    %v264 = vpop.trf.xlu0
    %v265 = vpop.trf.xlu0
    %v266 = vpop.trf.xlu0
    %v267 = vpop.trf.xlu0
    %v268 = vpop.trf.xlu0
    %v269 = vpop.trf.xlu0
    %v270 = vpop.trf.xlu0
    %v271 = vpop.trf.xlu0
    %v272 = vpop.trf.xlu0
    %v273 = vpop.trf.xlu0
    %v274 = vpop.trf.xlu0
    %v275 = vpop.trf.xlu0
    %v276 = vpop.trf.xlu0
    %v278 = vsel %vm180, %v261, 0
    %v281 = vsel %vm180, %v262, 0
    %v284 = vsel %vm180, %v263, 0
    %v287 = vsel %vm180, %v264, 0
    %289 = vmatpush.msra.mxu0 0.0
    %290 = vmatpush.msra.mxu0 0.0
    %291 = vmatpush.msra.mxu0 0.0
    %292 = vmatpush.msra.mxu0 0.0
    %293 = vmatpush.msra.mxu0 0.0
    %294 = vmatpush.msra.mxu0 0.0
    %295 = vmatpush.msra.mxu0 0.0
    %296 = vmatpush.msra.mxu0 0.0
    %297 = vmatpush.msra.mxu0 0.0
    %298 = vmatpush.msra.mxu0 0.0
    %299 = vmatpush.msra.mxu0 0.0
    %300 = vmatpush.msra.mxu0 0.0
    %301 = vmatpush.msra.mxu0 0.0
    %302 = vmatpush.msra.mxu0 0.0
    %303 = vmatpush.msra.mxu0 0.0
    %304 = vmatpush.msra.mxu0 %v244
    %305 = vmatmul.f32.gmra.mxu0 %v278
    %v306 = vpop.f32.mrf.mxu0
    %v307 = vadd.f32 0.0, %v306
    %308 = vmatmul.f32.gmra.mxu0 %v281
    %v309 = vpop.f32.mrf.mxu0
    %v310 = vadd.f32 0.0, %v309
    %311 = vmatmul.f32.gmra.mxu0 %v284
    %v312 = vpop.f32.mrf.mxu0
    %v313 = vadd.f32 0.0, %v312
    %314 = vmatmul.f32.gmra.mxu0 %v287
    %v315 = vpop.f32.mrf.mxu0
    %v316 = vadd.f32 0.0, %v315
    %317 = vdwg.mxu0
    %v318 = vsub.f32 %v211, %v307
    %v319 = vsub.f32 %v214, %v310
    %v320 = vsub.f32 %v217, %v313
    %v321 = vsub.f32 %v220, %v316
    %v322 = vmul.f32 %v318, %v318
    %v323 = vmul.f32 %v319, %v319
    %v324 = vmul.f32 %v320, %v320
    %v325 = vmul.f32 %v321, %v321
    %v326 = vsel %vm122, %v322, 0.0
    %v327 = vsel %vm122, %v323, 0.0
    %v328 = vadd.f32 %v326, %v327
    %v329 = vsel %vm122, %v324, 0.0
    %v330 = vadd.f32 %v328, %v329
    %v331 = vsel %vm122, %v325, 0.0
    %v332 = vadd.f32 %v330, %v331
    %333 = vadd.xlane.f32.xlu0 %v332
    %v334 = vpop.xlane.xlu0 %333
    %v335 = vrot.slane %v334, 4
    %v336 = vadd.f32 %v334, %v335
    %v337 = vrot.slane %v336, 2
    %v338 = vadd.f32 %v336, %v337
    %v339 = vrot.slane %v338, 1
    %v340 = vadd.f32 %v338, %v339
    %s341 = vtos %v340
    %s342 = sld [smem:[#allocation3]]
    %s343 = sld [smem:[#allocation4]]
    %p344 = scmp.eq.s32.totalorder %s342, %s343
    %s345 = scalar_select %p344, 1.0, 2.0
    %v346 = vld [vmem:[#allocation15] sm:$0x1]
    %s347 = smul.f32 %s341, %s345
    %v348 = vstv %s347
    %v349 = vadd.f32 %v346, %v348
    %vm350 = vcmask 0
    %351 = vst.msk [vmem:[#allocation15] sm:$0x1] %vm350, %v349
    // Predicated region
    $region46: #{tpu_custom_call.1} parent=1 // pred_check
      %p352 = pneg %p109
    $region47: #{tpu_custom_call.1} parent=1 // pred_check_branch
      %354 = sbr.rel (%p352) target = $region49
    $region48: #{tpu_custom_call.1} parent=1 // pred_region
      %v355 = vld [vmem:[#allocation15] sm:$0x1]
      %v356 = vrsqrt.pop %v355
      %v357 = vmul.f32 %v356, %v355
      %v358 = vmul.f32 %v357, %v356
      %v359 = vmul.f32 0.5, %v358
      %v360 = vsub.f32 1.5, %v359
      %v361 = vmul.f32 %v356, %v360
      %v362 = vmul.f32 %v355, %v361
      %vm363 = vcmp.eq.f32.partialorder %v355, inf
      %v364 = vsel %vm363, %v355, %v362
      %vm365 = vcmp.eq.f32.partialorder %v355, 0.0
      %v366 = vand.u32 %v355, 2147483648
      %v367 = vsel %vm365, %v366, %v364
      %v368 = vrcp.pop 32.0
      %v369 = vmul.f32 32.0, %v368
      %v370 = vsub.f32 1.0, %v369
      %v371 = vmul.f32 %v368, %v370
      %v372 = vadd.f32 %v368, %v371
      %vm373 = vweird.f32 %v368
      %v374 = vsel %vm373, %v368, %v372
      %v375 = vmul.f32 %v367, %v374
      %376 = vst.msk [vmem:[#allocation15] sm:$0x1] %vm350, %v375
    $region49: #{tpu_custom_call.1} parent=1 // pred_fallthru
      _
    // Predicated region
    $region50: #{tpu_custom_call.1} parent=1 // pred_check
      _
    $region51: #{tpu_custom_call.1} parent=1 // pred_check_branch
      %378 = sbr.rel (0) target = $region53
    $region52: #{tpu_custom_call.1} parent=1 // pred_region
      %380 = vsyncadd [#allocation7], 0
      %s382 = sshll.u32 [#allocation15], 4
      %s383 = int_to_ptr.vmem [resolvable:$true] %s382
      %s384 = sshll.u32 %s7, 4
      %s385 = int_to_ptr.hbm [resolvable:$true] %s384
      %387 = dma.vmem_to_hbm [thread:$0]  %s383, 16, %s385, [#allocation7]
    $region53: #{tpu_custom_call.1} parent=1 // pred_fallthru
      _
    // Predicated region
    $region54: #{tpu_custom_call.1} parent=1 // pred_check
      _
    $region55: #{tpu_custom_call.1} parent=1 // pred_check_branch
      %389 = sbr.rel (0) target = $region57
    $region56: #{tpu_custom_call.1} parent=1 // pred_region
      %391 = dma.done [#allocation7], 16
    $region57: #{tpu_custom_call.1} parent=1 // pred_fallthru
      _
    %392 = vsyncpa [#allocation6], 1
    %393 = vsyncpa [#allocation10], 1
    %394 = vsyncpa [#allocation13], 1
    %395 = vsyncpa [#allocation7], 1
    %396 = vsyncpa [#allocation8], 1

</llo_original>
